<compile_context>
chip_gen: v7x
topology: tpu7x:2x2x1
jax: 0.10.0
libtpu: 0.0.40
codegen_flags: <defaults>
</compile_context>

<pallas_src>
import functools

import jax
import jax.numpy as jnp
from jax import lax
from jax.experimental import pallas as pl
from jax.experimental.pallas import tpu as pltpu

# Batch-tile size for the multi-tile path. VMEM is not the binding resource at these
# sizes (a (2048, C<=128) bf16 tile is <512 KB double-buffered); 2048 rows amortizes
# the ~0.35 us/grid-step overhead while keeping f32 intermediates / spill pressure
# bounded (review: v5e/v6e want big tiles, v7x wants moderate tiles + deeper buffering).
_DEFAULT_TILE_B = 2048


def _per_example_loss(x_raw, tgt, label_smoothing):
    """Per-example label-smoothed CE. x_raw: (tb, C) any float dtype; tgt: (tb, 1) int32.

    Returns (tb, 1) float32. Classes live on lanes; all class reductions are lane
    reductions (XLU), batch stays on sublanes.
    """
    x = x_raw.astype(jnp.float32)                                  # (tb, C)
    num_classes = x.shape[1]

    # numerically stable log-softmax pieces along the class (lane) axis
    m = jnp.max(x, axis=1, keepdims=True)                          # (tb, 1)
    z = x - m
    lse = jnp.log(jnp.sum(jnp.exp(z), axis=1, keepdims=True))      # (tb, 1)
    sum_z = jnp.sum(z, axis=1, keepdims=True)                      # (tb, 1)

    col = lax.broadcasted_iota(jnp.int32, z.shape, 1)              # (tb, C)
    z_tgt = jnp.sum(jnp.where(col == tgt, z, 0.0), axis=1, keepdims=True)

    ls = jnp.float32(label_smoothing)
    off = ls / jnp.float32(num_classes - 1)
    # Exact fold of  -(off*(sum_z - C*lse)) - (1-ls-off)*(z_tgt - lse):
    #   off*(C-1) + 1 - ls = 1  ==>  per_ex = lse - off*sum_z - (1-ls-off)*z_tgt
    return lse - off * sum_z - (1.0 - ls - off) * z_tgt            # (tb, 1)


def _loss_single_kernel(pred_ref, tgt_ref, out_ref, *, label_smoothing, inv_batch):
    """Fast path: whole batch in one step; no grid, no masking, mean folded in."""
    per_ex = _per_example_loss(pred_ref[...], tgt_ref[...], label_smoothing)
    out_ref[...] = jnp.sum(per_ex, keepdims=True) * jnp.float32(inv_batch)


def _loss_tiled_kernel(pred_ref, tgt_ref, out_ref, acc_ref, *,
                       label_smoothing, batch_size, tile_b):
    """Tiled path: accumulate per-example losses, reduce once at the last step."""
    i = pl.program_id(0)
    nt = pl.num_programs(0)

    @pl.when(i == 0)
    def _init():
        acc_ref[...] = jnp.zeros_like(acc_ref)

    per_ex = _per_example_loss(pred_ref[...], tgt_ref[...], label_smoothing)  # (tb, 1)

    if batch_size % tile_b != 0:
        # Only the last tile is ragged; full tiles skip the mask math entirely.
        @pl.when(i < nt - 1)
        def _acc_full():
            acc_ref[...] += per_ex

        @pl.when(i == nt - 1)
        def _acc_tail():
            row = lax.broadcasted_iota(jnp.int32, per_ex.shape, 0)
            valid = (i * tile_b + row) < batch_size
            # Must be a select (not multiply-by-mask): out-of-bounds rows of the
            # partial block hold garbage and may produce NaN/Inf in per_ex.
            acc_ref[...] += jnp.where(valid, per_ex, 0.0)
    else:
        acc_ref[...] += per_ex

    @pl.when(i == nt - 1)
    def _finalize():
        out_ref[...] = (jnp.sum(acc_ref[...], keepdims=True)
                        * jnp.float32(1.0 / batch_size))


def get_loss(pred, target, trans_feat=None, *, weight_decay=0.0001,
             label_smoothing=0.1, tile_b=None):
    """pred: [B, C] logits (any float dtype); target: [B] int labels; trans_feat unused."""
    del trans_feat  # unused by the reference loss (weight-decay loop is a no-op)
    B, C = pred.shape
    if C < 2:
        raise ValueError("label smoothing requires at least 2 classes")

    tgt = target.astype(jnp.int32).reshape(B, 1)   # batch on sublanes, like the logits
    if tile_b is None:
        tile_b = _DEFAULT_TILE_B

    if B <= tile_b:
        # Single-step fast path: whole arrays in VMEM, no grid, no masking.
        out = pl.pallas_call(
            functools.partial(_loss_single_kernel,
                              label_smoothing=float(label_smoothing),
                              inv_batch=1.0 / B),
            out_shape=jax.ShapeDtypeStruct((1, 1), jnp.float32),
        )(pred, tgt)
    else:
        tb = int(tile_b)
        assert tb % 8 == 0, "batch tile must be a multiple of 8 (sublane constraint)"
        num_tiles = -(-B // tb)
        grid_spec = pltpu.PrefetchScalarGridSpec(
            num_scalar_prefetch=0,
            grid=(num_tiles,),
            in_specs=[
                # logits tile in native dtype/layout; 3-deep buffering hides DMA latency
                pl.BlockSpec((tb, C), lambda i: (i, 0), pipeline_mode=pl.Buffered(3)),
                pl.BlockSpec((tb, 1), lambda i: (i, 0)),
            ],
            out_specs=pl.BlockSpec((1, 1), lambda i: (0, 0)),
            scratch_shapes=[pltpu.VMEM((tb, 1), jnp.float32)],
        )
        out = pl.pallas_call(
            functools.partial(_loss_tiled_kernel,
                              label_smoothing=float(label_smoothing),
                              batch_size=B, tile_b=tb),
            out_shape=jax.ShapeDtypeStruct((1, 1), jnp.float32),
            grid_spec=grid_spec,
            compiler_params=pltpu.CompilerParams(
                dimension_semantics=("arbitrary",)),
        )(pred, tgt)

    # TODO(synk): the reference's weight-decay loop iterates pred.named_parameters(),
    # which is empty for a plain tensor, so that term is exactly 0; `weight_decay`
    # is kept only for signature fidelity.
    del weight_decay
    return out[0, 0]


def _reference_loss(pred, target, label_smoothing=0.1):
    """Pure-JAX reference for sanity checking."""
    _, C = pred.shape
    one_hot = jax.nn.one_hot(target, C, dtype=jnp.float32)
    smoothed = one_hot * (1 - label_smoothing) + (1 - one_hot) * label_smoothing / (C - 1)
    logp = jax.nn.log_softmax(pred.astype(jnp.float32), axis=1)
    return jnp.mean(-jnp.sum(smoothed * logp, axis=1))


if __name__ == "__main__":
    key = jax.random.PRNGKey(0)
    k1, k2, k3, k4, k5 = jax.random.split(key, 5)

    # 1) small shapes matching the module (pointnet2 classification head) -- fast path
    B, C = 8, 16
    pred = jax.random.normal(k1, (B, C), jnp.float32) * 2.0
    target = jax.random.randint(k2, (B,), 0, C, dtype=jnp.int32)
    trans_feat = jax.random.normal(k3, (B, 3, 3), jnp.float32)  # unused, as in reference
    loss = jax.block_until_ready(get_loss(pred, target, trans_feat))
    ref = _reference_loss(pred, target)
    assert jnp.allclose(loss, ref, atol=1e-5, rtol=1e-5), (loss, ref)

    # 2) bf16 (native-dtype) logits, larger head -- still the single-step fast path
    B2, C2 = 200, 40
    pred2 = (jax.random.normal(k4, (B2, C2), jnp.float32) * 2.0).astype(jnp.bfloat16)
    target2 = jax.random.randint(k5, (B2,), 0, C2, dtype=jnp.int32)
    loss2 = jax.block_until_ready(get_loss(pred2, target2, None))
    ref2 = _reference_loss(pred2, target2)
    assert jnp.allclose(loss2, ref2, atol=1e-4, rtol=1e-4), (loss2, ref2)

    # 3) force the tiled/accumulating path with a ragged tail (200 = 3*64 + 8)
    pred3 = pred2.astype(jnp.float32)
    loss3 = jax.block_until_ready(get_loss(pred3, target2, None, tile_b=64))
    ref3 = _reference_loss(pred3, target2)
    assert jnp.allclose(loss3, ref3, atol=1e-5, rtol=1e-5), (loss3, ref3)

    print("KERNEL_OK")
</pallas_src>

<mosaic_0001>
module attributes {stable_mosaic.version = 11 : i64} {
  func.func @_loss_single_kernel(%arg0: memref<8x16xf32, #tpu.memory_space<vmem>>, %arg1: memref<8x1xi32, #tpu.memory_space<vmem>>, %arg2: memref<1x1xf32, #tpu.memory_space<vmem>>) attributes {dimension_semantics = [], scalar_prefetch = 0 : i64, scratch_operands = 0 : i64, tpu.core_type = #tpu.core_type<tc>} {
    %c0 = arith.constant 0 : index
    %c0_0 = arith.constant 0 : index
    %0 = vector.load %arg0[%c0, %c0_0] : memref<8x16xf32, #tpu.memory_space<vmem>>, vector<8x16xf32>
    %c0_1 = arith.constant 0 : index
    %c0_2 = arith.constant 0 : index
    %1 = vector.load %arg1[%c0_1, %c0_2] : memref<8x1xi32, #tpu.memory_space<vmem>>, vector<8x1xi32>
    %cst = arith.constant dense<0xFF800000> : vector<8xf32>
    %2 = vector.multi_reduction <maximumf>, %0, %cst [1] : vector<8x16xf32> to vector<8xf32>
    %3 = vector.shape_cast %2 : vector<8xf32> to vector<8x1xf32>
    %4 = vector.broadcast %3 : vector<8x1xf32> to vector<8x16xf32>
    %5 = arith.subf %0, %4 : vector<8x16xf32>
    %6 = math.exp %5 : vector<8x16xf32>
    %cst_3 = arith.constant dense<0.000000e+00> : vector<8xf32>
    %7 = vector.multi_reduction <add>, %6, %cst_3 [1] : vector<8x16xf32> to vector<8xf32>
    %8 = vector.shape_cast %7 : vector<8xf32> to vector<8x1xf32>
    %9 = math.log %8 : vector<8x1xf32>
    %cst_4 = arith.constant dense<0.000000e+00> : vector<8xf32>
    %10 = vector.multi_reduction <add>, %5, %cst_4 [1] : vector<8x16xf32> to vector<8xf32>
    %11 = vector.shape_cast %10 : vector<8xf32> to vector<8x1xf32>
    %12 = tpu.iota {dimensions = array<i32: 1>} : vector<8x16xi32>
    %13 = vector.broadcast %1 : vector<8x1xi32> to vector<8x16xi32>
    %14 = arith.cmpi eq, %12, %13 : vector<8x16xi32>
    %cst_5 = arith.constant 0.000000e+00 : f32
    %15 = vector.broadcast %cst_5 : f32 to vector<8x16xf32>
    %16 = arith.select %14, %5, %15 : vector<8x16xi1>, vector<8x16xf32>
    %cst_6 = arith.constant dense<0.000000e+00> : vector<8xf32>
    %17 = vector.multi_reduction <add>, %16, %cst_6 [1] : vector<8x16xf32> to vector<8xf32>
    %18 = vector.shape_cast %17 : vector<8xf32> to vector<8x1xf32>
    %cst_7 = arith.constant 1.000000e-01 : f32
    %cst_8 = arith.constant 1.500000e+01 : f32
    %19 = arith.divf %cst_7, %cst_8 : f32
    %20 = vector.broadcast %19 : f32 to vector<8x1xf32>
    %21 = arith.mulf %20, %11 : vector<8x1xf32>
    %22 = arith.subf %9, %21 : vector<8x1xf32>
    %cst_9 = arith.constant 1.000000e+00 : f32
    %cst_10 = arith.constant 1.000000e-01 : f32
    %23 = arith.subf %cst_9, %cst_10 : f32
    %24 = arith.subf %23, %19 : f32
    %25 = vector.broadcast %24 : f32 to vector<8x1xf32>
    %26 = arith.mulf %25, %18 : vector<8x1xf32>
    %27 = arith.subf %22, %26 : vector<8x1xf32>
    %28 = vector.shape_cast %27 : vector<8x1xf32> to vector<1x8x1xf32>
    %cst_11 = arith.constant dense<0.000000e+00> : vector<1xf32>
    %29 = vector.multi_reduction <add>, %28, %cst_11 [1, 2] : vector<1x8x1xf32> to vector<1xf32>
    %30 = vector.shape_cast %29 : vector<1xf32> to vector<1x1x1xf32>
    %31 = vector.extract %30[0, 0, 0] : f32 from vector<1x1x1xf32>
    %32 = vector.broadcast %31 : f32 to vector<1x1xf32>
    %cst_12 = arith.constant 1.250000e-01 : f32
    %33 = vector.broadcast %cst_12 : f32 to vector<1x1xf32>
    %34 = arith.mulf %32, %33 : vector<1x1xf32>
    %c0_13 = arith.constant 0 : index
    %c0_14 = arith.constant 0 : index
    %35 = vector.load %arg2[%c0_13, %c0_14] : memref<1x1xf32, #tpu.memory_space<vmem>>, vector<1x1xf32>
    tpu.vector_store %arg2[%c0_13, %c0_14], %34 {strides = array<i32>} : memref<1x1xf32, #tpu.memory_space<vmem>>, vector<1x1xf32>,
    return
  }
}

</mosaic_0001>

<llo_original>
// kernel: tpu_custom_call.1
$region0: #{tpu_custom_call.1}
  #allocation0 [shape = 'u32[]', space=smem, size = 0x4, offset = 0x4, fixed_abs, tag = 'smem constant byte address 0x4 - core index']
  #allocation1 [shape = 'u32[144,128]{1,0:T(1,128)}', space=vmem, size = 0x12000, scoped, tag = 'internal scratch']
  %s0 = inlined_call_operand.vmem [shape: f32[8,16], index: 0, kind: input, shape index: {}]
  %s1 = inlined_call_operand.vmem [shape: s32[8,1], index: 1, kind: input, shape index: {}]
  %s2 = inlined_call_operand.hbm [shape: f32[1,1], index: 2, kind: output, shape index: {}]
  %s3 = sld [smem:[#allocation0]]
  $region18: #{tpu_custom_call.1} parent=0
    _
  %s5 = ssub.s32 1, %s3
  %s6 = scalar_select 0, %s5, %s3
  $region1: #{tpu_custom_call.1} parent=0
    #allocation2 [shape = 'u8[512]{0}', space=vmem, size = 0x400, scoped, tag = 'output window, operand 0, single buffered']
    #allocation3 [shape = 's32[1]{0}', space=sflag, size = 0x4, scoped, tag = 'scoped memory for tpu_custom_call.1']
    %7 = vsyncpa [#allocation3], 0
    // Predicated region
    $region2: #{tpu_custom_call.1} parent=1 // pred_check
      _
    $region3: #{tpu_custom_call.1} parent=1 // pred_check_branch
      %9 = sbr.rel (0) target = $region5
    $region4: #{tpu_custom_call.1} parent=1 // pred_region
      _
    $region5: #{tpu_custom_call.1} parent=1 // pred_fallthru
      _
    // Predicated region
    $region6: #{tpu_custom_call.1} parent=1 // pred_check
      _
    $region7: #{tpu_custom_call.1} parent=1 // pred_check_branch
      %11 = sbr.rel (0) target = $region9
    $region8: #{tpu_custom_call.1} parent=1 // pred_region
      _
    $region9: #{tpu_custom_call.1} parent=1 // pred_fallthru
      _
    %v12 = vld [vmem:[%s0] sm:$0xff]
    %v13 = vld [vmem:[%s1] sm:$0xff]
    %vm14 = vcmask 130048
    %v15 = vsel %vm14, %v12, -inf
    %16 = vmax.xlane.f32.xlu0 %v15
    %v17 = vpop.xlane.xlu0 %16
    %v18 = vsub.f32 %v12, %v17
    %v19 = vmul.f32 %v18, 1.442695
    %v20 = vpow.pop %v19
    %v21 = vsel %vm14, %v20, 0.0
    %22 = vadd.xlane.f32.xlu0 %v21
    %v23 = vpop.xlane.xlu0 %22
    %v24 = vlog2.pop %v23
    %v25 = vmul.f32 %v24, 0.6931472
    %v26 = vsel %vm14, %v18, 0.0
    %27 = vadd.xlane.f32.xlu0 %v26
    %v28 = vpop.xlane.xlu0 %27
    %v29 = vlaneseq
    %v30 = vand.u32 %v29, 127
    %31 = vset.pattern.permute.xlu0 0
    %32 = vperm.xlu0 %31, %v13
    %v33 = vpop.permute.xlu0 %32
    %vm34 = vcmp.eq.s32.totalorder %v30, %v33
    %v35 = vsel %vm34, %v18, 0.0
    %v36 = vsel %vm14, %v35, 0.0
    %37 = vadd.xlane.f32.xlu0 %v36
    %v38 = vpop.xlane.xlu0 %37
    %v39 = vmul.f32 %v28, 0.006666667
    %v40 = vsub.f32 %v25, %v39
    %v41 = vmul.f32 %v38, 0.8933333
    %v42 = vsub.f32 %v40, %v41
    %vm43 = vcmask 7168
    %v44 = vsel %vm43, %v42, 0.0
    %45 = vadd.xlane.f32.xlu0 %v44
    %v46 = vpop.xlane.xlu0 %45
    %v47 = vrot.slane %v46, 4
    %v48 = vadd.f32 %v46, %v47
    %v49 = vrot.slane %v48, 2
    %v50 = vadd.f32 %v48, %v49
    %v51 = vrot.slane %v50, 1
    %v52 = vadd.f32 %v50, %v51
    %s53 = vtos %v52
    %v54 = vstv %s53
    %v55 = vmul.f32 %v54, 0.125
    %vm56 = vcmask 0
    %57 = vst.msk [vmem:[#allocation2] sm:$0x1] %vm56, %v55
    // Predicated region
    $region10: #{tpu_custom_call.1} parent=1 // pred_check
      _
    $region11: #{tpu_custom_call.1} parent=1 // pred_check_branch
      %59 = sbr.rel (0) target = $region13
    $region12: #{tpu_custom_call.1} parent=1 // pred_region
      %s61 = ssub.s32 16, 16
      %62 = vsyncadd [#allocation3], %s61
      %s64 = sshll.u32 [#allocation2], 4
      %s65 = int_to_ptr.vmem [resolvable:$true] %s64
      %67 = dma.vmem_to_hbm [thread:$0]  %s65, 16, %s2, [#allocation3]
    $region13: #{tpu_custom_call.1} parent=1 // pred_fallthru
      _
    // Predicated region
    $region14: #{tpu_custom_call.1} parent=1 // pred_check
      _
    $region15: #{tpu_custom_call.1} parent=1 // pred_check_branch
      %69 = sbr.rel (0) target = $region17
    $region16: #{tpu_custom_call.1} parent=1 // pred_region
      %70 = dma.done [#allocation3], 16
    $region17: #{tpu_custom_call.1} parent=1 // pred_fallthru
      _
    %71 = vsyncpa [#allocation3], 1

</llo_original>
